<compile_context>
chip_gen: v5e
topology: v5e:2x2
jax: 0.10.0
libtpu: 0.0.40
codegen_flags: <defaults>
</compile_context>

<pallas_src>
import functools

import jax
import jax.numpy as jnp
from jax.experimental import pallas as pl
from jax.experimental.pallas import tpu as pltpu


_LANE = 128        # lane width (last-dim alignment)
_SUBLANE = 16      # bf16 sublane packing (also covers f32's 8)
_NEG_SLOPE = 0.01  # torch.nn.LeakyReLU default negative_slope


def _round_up(x, m):
    return (x + m - 1) // m * m


# ---------------------------------------------------------------------------
# Pallas kernel: one batch tile through the whole MLP (matmuls + LeakyReLU +
# classifier head). Weights/biases are VMEM-resident (single-buffered) across
# the batch grid; feat and logits are written into one lane-dense slab.
# ---------------------------------------------------------------------------
def _finetune_fc_kernel(depth, feat_pad, x_ref, *refs):
    # refs layout:
    #   [w0, b0, ..., w_{depth-1}, b_{depth-1}, wc, bc, out_slab]
    # weights: bf16 (in_pad, out_pad); biases: f32 (1, out_pad)
    # out_slab: (tile_b, feat_pad + cls_pad) = [features | logits]
    n_param = 2 * (depth + 1)
    params = refs[:n_param]
    out_ref = refs[n_param]

    h_lo = x_ref[...]                       # bf16 activations feeding the MXU
    h_f32 = None
    for layer in range(depth):              # unrolled at trace time
        w = params[2 * layer][...]
        b = params[2 * layer + 1][...]
        z = jnp.dot(h_lo, w, preferred_element_type=jnp.float32) + b
        h_f32 = jnp.where(z > 0, z, _NEG_SLOPE * z)   # LeakyReLU in f32 (VPU)
        h_lo = h_f32.astype(jnp.bfloat16)

    # Penultimate-layer features (post-activation) -> left half of the slab.
    out_ref[:, :feat_pad] = h_f32.astype(out_ref.dtype)

    # Classifier head (no softmax -- matches forward()) -> right half.
    wc = params[2 * depth][...]
    bc = params[2 * depth + 1][...]
    logits = jnp.dot(h_lo, wc, preferred_element_type=jnp.float32) + bc
    out_ref[:, feat_pad:] = logits.astype(out_ref.dtype)


# ---------------------------------------------------------------------------
# Parameter init (glue): PyTorch-style uniform init, weights stored (in, out).
# ---------------------------------------------------------------------------
def init_finetune_fc_params(key, input_size, width, depth, n_classes,
                            feature_repr_width=None, dtype=jnp.float32):
    if depth < 1:
        raise ValueError('Depth less than 1!')
    if feature_repr_width is None:
        feature_repr_width = width

    dims = []
    in_dim = input_size
    for layer in range(depth):
        out_dim = feature_repr_width if layer == depth - 1 else width
        dims.append((in_dim, out_dim))
        in_dim = out_dim
    dims.append((feature_repr_width, n_classes))  # classifier

    params = []
    for (fan_in, fan_out) in dims:
        key, kw, kb = jax.random.split(key, 3)
        bound = 1.0 / jnp.sqrt(jnp.float32(fan_in))
        w = jax.random.uniform(kw, (fan_in, fan_out), dtype, -bound, bound)
        b = jax.random.uniform(kb, (1, fan_out), dtype, -bound, bound)
        params.append((w, b))
    return params


# ---------------------------------------------------------------------------
# One-time parameter preparation: pad to lane multiples, cast weights to bf16
# and biases to f32. Hoisted out of the forward path so repeated forward calls
# do zero per-call pad/copy glue (zero padding is exact for Linear+LeakyReLU).
# ---------------------------------------------------------------------------
def prepare_finetune_fc_params(params, input_size):
    in_pad = _round_up(input_size, _LANE)
    flat, out_pads, dims = [], [], []
    prev_pad = in_pad
    for (w, b) in params:
        fan_in, fan_out = w.shape
        out_pad = _round_up(fan_out, _LANE)
        w_p = jnp.zeros((prev_pad, out_pad), jnp.bfloat16)
        w_p = w_p.at[:fan_in, :fan_out].set(w.astype(jnp.bfloat16))
        b_p = jnp.zeros((1, out_pad), jnp.float32)
        b_p = b_p.at[:, :fan_out].set(b.reshape(1, -1).astype(jnp.float32))
        flat.extend([w_p, b_p])
        out_pads.append(out_pad)
        dims.append((fan_in, fan_out))
        prev_pad = out_pad
    return {
        'flat': tuple(flat),
        'in_pad': in_pad,
        'out_pads': tuple(out_pads),
        'dims': tuple(dims),
        'input_size': input_size,
    }


def _resident_param_spec(shape):
    # Constant block index across the whole grid -> single-buffer it so the
    # resident parameter set is allocated once in VMEM, not double-buffered.
    idx_map = lambda i: (0, 0)
    try:
        return pl.BlockSpec(shape, idx_map, pipeline_mode=pl.Buffered(1))
    except TypeError:  # older API without pipeline_mode kwarg
        return pl.BlockSpec(shape, idx_map)


def _vmem_budget_bytes(need_bytes):
    # Generation-aware budget: leave headroom below physical per-TC VMEM for
    # Mosaic internal scratch / spill; don't impose a v7x 64 MiB cap on
    # v5e/v6e's 128 MiB parts.
    try:
        cap = int(pltpu.get_tpu_info().vmem_capacity_bytes)
    except Exception:
        cap = 64 << 20
    cap = max(cap - (12 << 20), 16 << 20)
    return int(min(max(need_bytes, 16 << 20), cap))


# ---------------------------------------------------------------------------
# Wrapper: batch tiling + pallas_call. `prepared` comes from
# prepare_finetune_fc_params (padded/cast once, reused every call).
# ---------------------------------------------------------------------------
def finetune_fc_forward(x, prepared, depth, *, tile_b=1024):
    """Pallas implementation of FineTuneFC.forward(x) -> (features, logits)."""
    if depth < 1:
        raise ValueError('Depth less than 1!')

    batch, input_size = x.shape
    assert input_size == prepared['input_size']
    flat_params = prepared['flat']
    in_pad = prepared['in_pad']
    out_pads = prepared['out_pads']
    feature_repr_width = prepared['dims'][depth - 1][1]
    n_classes = prepared['dims'][depth][1]
    feat_pad = out_pads[depth - 1]
    cls_pad = out_pads[depth]
    out_dtype = x.dtype

    # ---- batch tiling: large tile (amortize ~0.35us/grid-step overhead), but
    # resized to ceil(batch / n_steps) so padded-row waste is <= one sublane. --
    tile_cap = _round_up(max(min(tile_b, batch), 1), _SUBLANE)
    n_steps = int(pl.cdiv(batch, tile_cap))
    tile_b = _round_up(-(-batch // n_steps), _SUBLANE)
    batch_pad = n_steps * tile_b
    # TODO(synk): on v7x (2 TCs) prefer an even n_steps >= 2 for megacore balance.

    x_p = jnp.zeros((batch_pad, in_pad), jnp.bfloat16)
    x_p = x_p.at[:batch, :input_size].set(x.astype(jnp.bfloat16))

    slab_pad = feat_pad + cls_pad
    grid = (n_steps,)

    x_spec = pl.BlockSpec((tile_b, in_pad), lambda i: (i, 0))
    param_specs = [_resident_param_spec(p.shape) for p in flat_params]
    out_spec = pl.BlockSpec((tile_b, slab_pad), lambda i: (i, 0))

    # VMEM need: single-buffered resident params + double-buffered x/out tiles
    # + f32 working set + fixed headroom; clamped generation-aware.
    resident = sum(p.size * p.dtype.itemsize for p in flat_params)
    io_tiles = 2 * tile_b * (2 * in_pad + 2 * slab_pad)           # bf16 in/out
    work = 8 * tile_b * max(list(out_pads) + [in_pad]) * 4        # f32 temps
    vmem_budget = _vmem_budget_bytes(resident + io_tiles + work + (4 << 20))

    kernel = functools.partial(_finetune_fc_kernel, depth, feat_pad)

    out_slab = pl.pallas_call(
        kernel,
        grid=grid,
        out_shape=jax.ShapeDtypeStruct((batch_pad, slab_pad), jnp.bfloat16),
        in_specs=[x_spec] + param_specs,
        out_specs=out_spec,
        compiler_params=pltpu.CompilerParams(
            dimension_semantics=("parallel",),
            vmem_limit_bytes=vmem_budget,
        ),
    )(x_p, *flat_params)

    # TODO(synk): if depth*width^2 weights exceed ~half the per-TC VMEM, stream
    # weights per layer (manual make_async_copy double-buffer) instead of
    # keeping them all resident.
    feat = out_slab[:batch, :feature_repr_width].astype(out_dtype)
    logits = out_slab[:batch, feat_pad:feat_pad + n_classes].astype(out_dtype)
    return feat, logits


# Pure-JAX reference mirroring the kernel's bf16-matmul / f32-accumulate path.
def _reference_forward(x, params, depth):
    h = x.astype(jnp.bfloat16)
    feat = None
    for layer in range(depth):
        w, b = params[layer]
        z = jnp.dot(h, w.astype(jnp.bfloat16),
                    preferred_element_type=jnp.float32) + b.astype(jnp.float32)
        feat = jnp.where(z > 0, z, _NEG_SLOPE * z)
        h = feat.astype(jnp.bfloat16)
    wc, bc = params[depth]
    logits = jnp.dot(h, wc.astype(jnp.bfloat16),
                     preferred_element_type=jnp.float32) + bc.astype(jnp.float32)
    return feat.astype(x.dtype), logits.astype(x.dtype)


if __name__ == "__main__":
    # Small shapes consistent with the module: dense MLP on (batch, input_size).
    batch = 64
    input_size = 16
    width = 32
    depth = 3
    n_classes = 8

    key = jax.random.PRNGKey(0)
    key, kx = jax.random.split(key)
    x = jax.random.normal(kx, (batch, input_size), jnp.float32)

    params = init_finetune_fc_params(key, input_size, width, depth, n_classes)
    prepared = prepare_finetune_fc_params(params, input_size)

    feat, logits = finetune_fc_forward(x, prepared, depth)
    feat = jax.block_until_ready(feat)
    logits = jax.block_until_ready(logits)

    ref_feat, ref_logits = _reference_forward(x, params, depth)
    assert feat.shape == (batch, width), feat.shape
    assert logits.shape == (batch, n_classes), logits.shape
    assert jnp.allclose(feat, ref_feat, atol=2e-2, rtol=2e-2), (
        float(jnp.max(jnp.abs(feat - ref_feat))))
    assert jnp.allclose(logits, ref_logits, atol=2e-2, rtol=2e-2), (
        float(jnp.max(jnp.abs(logits - ref_logits))))

    print("KERNEL_OK")
</pallas_src>

<mosaic_0001>
module attributes {stable_mosaic.version = 11 : i64} {
  func.func @_finetune_fc_kernel(%arg0: i32, %arg1: memref<64x128xbf16, #tpu.memory_space<vmem>>, %arg2: memref<128x128xbf16, #tpu.memory_space<vmem>>, %arg3: memref<1x128xf32, #tpu.memory_space<vmem>>, %arg4: memref<128x128xbf16, #tpu.memory_space<vmem>>, %arg5: memref<1x128xf32, #tpu.memory_space<vmem>>, %arg6: memref<128x128xbf16, #tpu.memory_space<vmem>>, %arg7: memref<1x128xf32, #tpu.memory_space<vmem>>, %arg8: memref<128x128xbf16, #tpu.memory_space<vmem>>, %arg9: memref<1x128xf32, #tpu.memory_space<vmem>>, %arg10: memref<64x256xbf16, #tpu.memory_space<vmem>>) attributes {dimension_semantics = [#tpu.dimension_semantics<parallel>], iteration_bounds = array<i64: 1>, scalar_prefetch = 0 : i64, scratch_operands = 0 : i64, tpu.core_type = #tpu.core_type<tc>, window_params = [{transform_indices = @transform_0, window_bounds = array<i64: 64, 128>}, {pipeline_mode = #tpu.pipeline_mode<synchronous>, transform_indices = @transform_1, window_bounds = array<i64: 128, 128>}, {pipeline_mode = #tpu.pipeline_mode<synchronous>, transform_indices = @transform_2, window_bounds = array<i64: 1, 128>}, {pipeline_mode = #tpu.pipeline_mode<synchronous>, transform_indices = @transform_3, window_bounds = array<i64: 128, 128>}, {pipeline_mode = #tpu.pipeline_mode<synchronous>, transform_indices = @transform_4, window_bounds = array<i64: 1, 128>}, {pipeline_mode = #tpu.pipeline_mode<synchronous>, transform_indices = @transform_5, window_bounds = array<i64: 128, 128>}, {pipeline_mode = #tpu.pipeline_mode<synchronous>, transform_indices = @transform_6, window_bounds = array<i64: 1, 128>}, {pipeline_mode = #tpu.pipeline_mode<synchronous>, transform_indices = @transform_7, window_bounds = array<i64: 128, 128>}, {pipeline_mode = #tpu.pipeline_mode<synchronous>, transform_indices = @transform_8, window_bounds = array<i64: 1, 128>}, {transform_indices = @transform_9, window_bounds = array<i64: 64, 256>}]} {
    %c0 = arith.constant 0 : index
    %c0_0 = arith.constant 0 : index
    %0 = vector.load %arg1[%c0, %c0_0] : memref<64x128xbf16, #tpu.memory_space<vmem>>, vector<64x128xbf16>
    %c0_1 = arith.constant 0 : index
    %c0_2 = arith.constant 0 : index
    %1 = vector.load %arg2[%c0_1, %c0_2] : memref<128x128xbf16, #tpu.memory_space<vmem>>, vector<128x128xbf16>
    %c0_3 = arith.constant 0 : index
    %c0_4 = arith.constant 0 : index
    %2 = vector.load %arg3[%c0_3, %c0_4] : memref<1x128xf32, #tpu.memory_space<vmem>>, vector<1x128xf32>
    %cst = arith.constant dense<0.000000e+00> : vector<64x128xf32>
    %3 = tpu.matmul %0, %1, %cst {dimension_numbers = #tpu.dot_dimension_numbers<[1], [0], [0], [1], [0, 0, 1, 1], [], []>} : vector<64x128xbf16>, vector<128x128xbf16>, vector<64x128xf32> -> vector<64x128xf32>
    %4 = vector.broadcast %2 : vector<1x128xf32> to vector<64x128xf32>
    %5 = arith.addf %3, %4 : vector<64x128xf32>
    %cst_5 = arith.constant 0.000000e+00 : f32
    %6 = vector.broadcast %cst_5 : f32 to vector<64x128xf32>
    %7 = arith.cmpf ogt, %5, %6 : vector<64x128xf32>
    %cst_6 = arith.constant 0.00999999977 : f32
    %8 = vector.broadcast %cst_6 : f32 to vector<64x128xf32>
    %9 = arith.mulf %8, %5 : vector<64x128xf32>
    %10 = arith.select %7, %5, %9 : vector<64x128xi1>, vector<64x128xf32>
    %11 = arith.truncf %10 : vector<64x128xf32> to vector<64x128xbf16>
    %c0_7 = arith.constant 0 : index
    %c0_8 = arith.constant 0 : index
    %12 = vector.load %arg4[%c0_7, %c0_8] : memref<128x128xbf16, #tpu.memory_space<vmem>>, vector<128x128xbf16>
    %c0_9 = arith.constant 0 : index
    %c0_10 = arith.constant 0 : index
    %13 = vector.load %arg5[%c0_9, %c0_10] : memref<1x128xf32, #tpu.memory_space<vmem>>, vector<1x128xf32>
    %cst_11 = arith.constant dense<0.000000e+00> : vector<64x128xf32>
    %14 = tpu.matmul %11, %12, %cst_11 {dimension_numbers = #tpu.dot_dimension_numbers<[1], [0], [0], [1], [0, 0, 1, 1], [], []>} : vector<64x128xbf16>, vector<128x128xbf16>, vector<64x128xf32> -> vector<64x128xf32>
    %15 = vector.broadcast %13 : vector<1x128xf32> to vector<64x128xf32>
    %16 = arith.addf %14, %15 : vector<64x128xf32>
    %cst_12 = arith.constant 0.000000e+00 : f32
    %17 = vector.broadcast %cst_12 : f32 to vector<64x128xf32>
    %18 = arith.cmpf ogt, %16, %17 : vector<64x128xf32>
    %cst_13 = arith.constant 0.00999999977 : f32
    %19 = vector.broadcast %cst_13 : f32 to vector<64x128xf32>
    %20 = arith.mulf %19, %16 : vector<64x128xf32>
    %21 = arith.select %18, %16, %20 : vector<64x128xi1>, vector<64x128xf32>
    %22 = arith.truncf %21 : vector<64x128xf32> to vector<64x128xbf16>
    %c0_14 = arith.constant 0 : index
    %c0_15 = arith.constant 0 : index
    %23 = vector.load %arg6[%c0_14, %c0_15] : memref<128x128xbf16, #tpu.memory_space<vmem>>, vector<128x128xbf16>
    %c0_16 = arith.constant 0 : index
    %c0_17 = arith.constant 0 : index
    %24 = vector.load %arg7[%c0_16, %c0_17] : memref<1x128xf32, #tpu.memory_space<vmem>>, vector<1x128xf32>
    %cst_18 = arith.constant dense<0.000000e+00> : vector<64x128xf32>
    %25 = tpu.matmul %22, %23, %cst_18 {dimension_numbers = #tpu.dot_dimension_numbers<[1], [0], [0], [1], [0, 0, 1, 1], [], []>} : vector<64x128xbf16>, vector<128x128xbf16>, vector<64x128xf32> -> vector<64x128xf32>
    %26 = vector.broadcast %24 : vector<1x128xf32> to vector<64x128xf32>
    %27 = arith.addf %25, %26 : vector<64x128xf32>
    %cst_19 = arith.constant 0.000000e+00 : f32
    %28 = vector.broadcast %cst_19 : f32 to vector<64x128xf32>
    %29 = arith.cmpf ogt, %27, %28 : vector<64x128xf32>
    %cst_20 = arith.constant 0.00999999977 : f32
    %30 = vector.broadcast %cst_20 : f32 to vector<64x128xf32>
    %31 = arith.mulf %30, %27 : vector<64x128xf32>
    %32 = arith.select %29, %27, %31 : vector<64x128xi1>, vector<64x128xf32>
    %33 = arith.truncf %32 : vector<64x128xf32> to vector<64x128xbf16>
    %34 = arith.truncf %32 : vector<64x128xf32> to vector<64x128xbf16>
    %c0_21 = arith.constant 0 : index
    %c0_22 = arith.constant 0 : index
    %35 = vector.load %arg10[%c0_21, %c0_22] : memref<64x256xbf16, #tpu.memory_space<vmem>>, vector<64x128xbf16>
    tpu.vector_store %arg10[%c0_21, %c0_22], %34 {strides = array<i32>} : memref<64x256xbf16, #tpu.memory_space<vmem>>, vector<64x128xbf16>,
    %c0_23 = arith.constant 0 : index
    %c0_24 = arith.constant 0 : index
    %36 = vector.load %arg8[%c0_23, %c0_24] : memref<128x128xbf16, #tpu.memory_space<vmem>>, vector<128x128xbf16>
    %c0_25 = arith.constant 0 : index
    %c0_26 = arith.constant 0 : index
    %37 = vector.load %arg9[%c0_25, %c0_26] : memref<1x128xf32, #tpu.memory_space<vmem>>, vector<1x128xf32>
    %cst_27 = arith.constant dense<0.000000e+00> : vector<64x128xf32>
    %38 = tpu.matmul %33, %36, %cst_27 {dimension_numbers = #tpu.dot_dimension_numbers<[1], [0], [0], [1], [0, 0, 1, 1], [], []>} : vector<64x128xbf16>, vector<128x128xbf16>, vector<64x128xf32> -> vector<64x128xf32>
    %39 = vector.broadcast %37 : vector<1x128xf32> to vector<64x128xf32>
    %40 = arith.addf %38, %39 : vector<64x128xf32>
    %41 = arith.truncf %40 : vector<64x128xf32> to vector<64x128xbf16>
    %c0_28 = arith.constant 0 : index
    %c128 = arith.constant 128 : index
    %42 = vector.load %arg10[%c0_28, %c128] : memref<64x256xbf16, #tpu.memory_space<vmem>>, vector<64x128xbf16>
    tpu.vector_store %arg10[%c0_28, %c128], %41 {strides = array<i32>} : memref<64x256xbf16, #tpu.memory_space<vmem>>, vector<64x128xbf16>,
    return
  }
  func.func @transform_0(%arg0: i32) -> (i32, i32) {
    %c0_i32 = arith.constant 0 : i32
    %c0_i32_0 = arith.constant 0 : i32
    return %arg0, %c0_i32 : i32, i32
  }
  func.func @transform_1(%arg0: i32) -> (i32, i32) {
    %c0_i32 = arith.constant 0 : i32
    %c0_i32_0 = arith.constant 0 : i32
    %c0_i32_1 = arith.constant 0 : i32
    return %c0_i32, %c0_i32_0 : i32, i32
  }
  func.func @transform_2(%arg0: i32) -> (i32, i32) {
    %c0_i32 = arith.constant 0 : i32
    %c0_i32_0 = arith.constant 0 : i32
    %c0_i32_1 = arith.constant 0 : i32
    return %c0_i32, %c0_i32_0 : i32, i32
  }
  func.func @transform_3(%arg0: i32) -> (i32, i32) {
    %c0_i32 = arith.constant 0 : i32
    %c0_i32_0 = arith.constant 0 : i32
    %c0_i32_1 = arith.constant 0 : i32
    return %c0_i32, %c0_i32_0 : i32, i32
  }
  func.func @transform_4(%arg0: i32) -> (i32, i32) {
    %c0_i32 = arith.constant 0 : i32
    %c0_i32_0 = arith.constant 0 : i32
    %c0_i32_1 = arith.constant 0 : i32
    return %c0_i32, %c0_i32_0 : i32, i32
  }
  func.func @transform_5(%arg0: i32) -> (i32, i32) {
    %c0_i32 = arith.constant 0 : i32
    %c0_i32_0 = arith.constant 0 : i32
    %c0_i32_1 = arith.constant 0 : i32
    return %c0_i32, %c0_i32_0 : i32, i32
  }
  func.func @transform_6(%arg0: i32) -> (i32, i32) {
    %c0_i32 = arith.constant 0 : i32
    %c0_i32_0 = arith.constant 0 : i32
    %c0_i32_1 = arith.constant 0 : i32
    return %c0_i32, %c0_i32_0 : i32, i32
  }
  func.func @transform_7(%arg0: i32) -> (i32, i32) {
    %c0_i32 = arith.constant 0 : i32
    %c0_i32_0 = arith.constant 0 : i32
    %c0_i32_1 = arith.constant 0 : i32
    return %c0_i32, %c0_i32_0 : i32, i32
  }
  func.func @transform_8(%arg0: i32) -> (i32, i32) {
    %c0_i32 = arith.constant 0 : i32
    %c0_i32_0 = arith.constant 0 : i32
    %c0_i32_1 = arith.constant 0 : i32
    return %c0_i32, %c0_i32_0 : i32, i32
  }
  func.func @transform_9(%arg0: i32) -> (i32, i32) {
    %c0_i32 = arith.constant 0 : i32
    %c0_i32_0 = arith.constant 0 : i32
    return %arg0, %c0_i32 : i32, i32
  }
}

</mosaic_0001>

<llo_original>
// kernel: tpu_custom_call.1
$region0: #{tpu_custom_call.1}
  #allocation0 [shape = 'u32[]', space=smem, size = 0x4, offset = 0x4, fixed_abs, tag = 'smem constant byte address 0x4 - core index']
  #allocation1 [shape = 'u32[72,128]{1,0:T(1,128)}', space=vmem, size = 0x9000, scoped, tag = 'internal scratch']
  %s0 = inlined_call_operand.hbm [shape: bf16[64,128], index: 0, kind: input, shape index: {}]
  %s1 = inlined_call_operand.hbm [shape: bf16[128,128], index: 1, kind: input, shape index: {}]
  %s2 = inlined_call_operand.vmem [shape: f32[1,128], index: 2, kind: input, shape index: {}]
  %s3 = inlined_call_operand.hbm [shape: bf16[128,128], index: 3, kind: input, shape index: {}]
  %s4 = inlined_call_operand.vmem [shape: f32[1,128], index: 4, kind: input, shape index: {}]
  %s5 = inlined_call_operand.hbm [shape: bf16[128,128], index: 5, kind: input, shape index: {}]
  %s6 = inlined_call_operand.vmem [shape: f32[1,128], index: 6, kind: input, shape index: {}]
  %s7 = inlined_call_operand.hbm [shape: bf16[128,128], index: 7, kind: input, shape index: {}]
  %s8 = inlined_call_operand.vmem [shape: f32[1,128], index: 8, kind: input, shape index: {}]
  %s9 = inlined_call_operand.hbm [shape: bf16[64,256], index: 9, kind: output, shape index: {}]
  %s10 = sld [smem:[#allocation0]]
  $region66: #{tpu_custom_call.1} parent=0
    _
  %s12 = ssub.s32 1, %s10
  %s13 = scalar_select 0, %s12, %s10
  $region1: #{tpu_custom_call.1} parent=0
    #allocation2 [shape = 'u8[16384]{0}', space=vmem, size = 0x4000, scoped, tag = 'input window, operand 0, single buffered']
    #allocation3 [shape = 's32[1]{0}', space=sflag, size = 0x4, scoped, tag = 'scoped memory for tpu_custom_call.1']
    #allocation4 [shape = 's32[1]{0}', space=sflag, size = 0x4, scoped, tag = 'scoped memory for tpu_custom_call.1']
    #allocation5 [shape = 'u8[32768]{0}', space=vmem, size = 0x8000, scoped, tag = 'input window, operand 1, single buffered']
    #allocation6 [shape = 's32[1]{0}', space=sflag, size = 0x4, scoped, tag = 'scoped memory for tpu_custom_call.1']
    #allocation7 [shape = 'u8[32768]{0}', space=vmem, size = 0x8000, scoped, tag = 'input window, operand 3, single buffered']
    #allocation8 [shape = 'u8[32768]{0}', space=vmem, size = 0x8000, scoped, tag = 'input window, operand 5, single buffered']
    #allocation9 [shape = 's32[1]{0}', space=sflag, size = 0x4, scoped, tag = 'scoped memory for tpu_custom_call.1']
    #allocation10 [shape = 'u8[32768]{0}', space=vmem, size = 0x8000, scoped, tag = 'input window, operand 7, single buffered']
    #allocation11 [shape = 'u8[32768]{0}', space=vmem, size = 0x8000, scoped, tag = 'output window, operand 0, single buffered']
    %14 = vsyncpa [#allocation3], 0
    %15 = vsyncpa [#allocation6], 0
    %16 = vsyncpa [#allocation9], 0
    %17 = vsyncpa [#allocation4], 0
    // Predicated region
    $region2: #{tpu_custom_call.1} parent=1 // pred_check
      _
    $region3: #{tpu_custom_call.1} parent=1 // pred_check_branch
      %19 = sbr.rel (0) target = $region5
    $region4: #{tpu_custom_call.1} parent=1 // pred_region
      %21 = vsyncadd [#allocation3], 0
      %s22 = sshll.u32 %s0, 4
      %s23 = int_to_ptr.hbm [resolvable:$true] %s22
      %s24 = sshll.u32 [#allocation2], 4
      %s25 = int_to_ptr.vmem [resolvable:$true] %s24
      %30 = dma.hbm_to_vmem [thread:$0]  %s23, 512, %s25, [#allocation3], 64, 64, 4
    $region5: #{tpu_custom_call.1} parent=1 // pred_fallthru
      _
    // Predicated region
    $region6: #{tpu_custom_call.1} parent=1 // pred_check
      _
    $region7: #{tpu_custom_call.1} parent=1 // pred_check_branch
      %32 = sbr.rel (0) target = $region9
    $region8: #{tpu_custom_call.1} parent=1 // pred_region
      %34 = vsyncadd [#allocation6], 0
      %s35 = sshll.u32 %s1, 4
      %s36 = int_to_ptr.hbm [resolvable:$true] %s35
      %s37 = sshll.u32 [#allocation5], 4
      %s38 = int_to_ptr.vmem [resolvable:$true] %s37
      %43 = dma.hbm_to_vmem [thread:$0]  %s36, 1024, %s38, [#allocation6], 64, 64, 4
    $region9: #{tpu_custom_call.1} parent=1 // pred_fallthru
      _
    // Predicated region
    $region10: #{tpu_custom_call.1} parent=1 // pred_check
      _
    $region11: #{tpu_custom_call.1} parent=1 // pred_check_branch
      %45 = sbr.rel (0) target = $region13
    $region12: #{tpu_custom_call.1} parent=1 // pred_region
      _
    $region13: #{tpu_custom_call.1} parent=1 // pred_fallthru
      _
    // Predicated region
    $region14: #{tpu_custom_call.1} parent=1 // pred_check
      _
    $region15: #{tpu_custom_call.1} parent=1 // pred_check_branch
      %47 = sbr.rel (0) target = $region17
    $region16: #{tpu_custom_call.1} parent=1 // pred_region
      %49 = vsyncadd [#allocation6], 0
      %s50 = sshll.u32 %s3, 4
      %s51 = int_to_ptr.hbm [resolvable:$true] %s50
      %s52 = sshll.u32 [#allocation7], 4
      %s53 = int_to_ptr.vmem [resolvable:$true] %s52
      %58 = dma.hbm_to_vmem [thread:$0]  %s51, 1024, %s53, [#allocation6], 64, 64, 4
    $region17: #{tpu_custom_call.1} parent=1 // pred_fallthru
      _
    // Predicated region
    $region18: #{tpu_custom_call.1} parent=1 // pred_check
      _
    $region19: #{tpu_custom_call.1} parent=1 // pred_check_branch
      %60 = sbr.rel (0) target = $region21
    $region20: #{tpu_custom_call.1} parent=1 // pred_region
      _
    $region21: #{tpu_custom_call.1} parent=1 // pred_fallthru
      _
    // Predicated region
    $region22: #{tpu_custom_call.1} parent=1 // pred_check
      _
    $region23: #{tpu_custom_call.1} parent=1 // pred_check_branch
      %62 = sbr.rel (0) target = $region25
    $region24: #{tpu_custom_call.1} parent=1 // pred_region
      %64 = vsyncadd [#allocation9], 0
      %s65 = sshll.u32 %s5, 4
      %s66 = int_to_ptr.hbm [resolvable:$true] %s65
      %s67 = sshll.u32 [#allocation8], 4
      %s68 = int_to_ptr.vmem [resolvable:$true] %s67
      %73 = dma.hbm_to_vmem [thread:$0]  %s66, 1024, %s68, [#allocation9], 64, 64, 4
    $region25: #{tpu_custom_call.1} parent=1 // pred_fallthru
      _
    // Predicated region
    $region26: #{tpu_custom_call.1} parent=1 // pred_check
      _
    $region27: #{tpu_custom_call.1} parent=1 // pred_check_branch
      %75 = sbr.rel (0) target = $region29
    $region28: #{tpu_custom_call.1} parent=1 // pred_region
      _
    $region29: #{tpu_custom_call.1} parent=1 // pred_fallthru
      _
    // Predicated region
    $region30: #{tpu_custom_call.1} parent=1 // pred_check
      _
    $region31: #{tpu_custom_call.1} parent=1 // pred_check_branch
      %77 = sbr.rel (0) target = $region33
    $region32: #{tpu_custom_call.1} parent=1 // pred_region
      %79 = vsyncadd [#allocation9], 0
      %s80 = sshll.u32 %s7, 4
      %s81 = int_to_ptr.hbm [resolvable:$true] %s80
      %s82 = sshll.u32 [#allocation10], 4
      %s83 = int_to_ptr.vmem [resolvable:$true] %s82
      %88 = dma.hbm_to_vmem [thread:$0]  %s81, 1024, %s83, [#allocation9], 64, 64, 4
    $region33: #{tpu_custom_call.1} parent=1 // pred_fallthru
      _
    // Predicated region
    $region34: #{tpu_custom_call.1} parent=1 // pred_check
      _
    $region35: #{tpu_custom_call.1} parent=1 // pred_check_branch
      %90 = sbr.rel (0) target = $region37
    $region36: #{tpu_custom_call.1} parent=1 // pred_region
      _
    $region37: #{tpu_custom_call.1} parent=1 // pred_fallthru
      _
    // Predicated region
    $region38: #{tpu_custom_call.1} parent=1 // pred_check
      _
    $region39: #{tpu_custom_call.1} parent=1 // pred_check_branch
      %92 = sbr.rel (0) target = $region41
    $region40: #{tpu_custom_call.1} parent=1 // pred_region
      %94 = dma.done [#allocation3], 512
    $region41: #{tpu_custom_call.1} parent=1 // pred_fallthru
      _
    // Predicated region
    $region42: #{tpu_custom_call.1} parent=1 // pred_check
      _
    $region43: #{tpu_custom_call.1} parent=1 // pred_check_branch
      %96 = sbr.rel (0) target = $region45
    $region44: #{tpu_custom_call.1} parent=1 // pred_region
      %98 = dma.done [#allocation6], 1024
    $region45: #{tpu_custom_call.1} parent=1 // pred_fallthru
      _
    // Predicated region
    $region46: #{tpu_custom_call.1} parent=1 // pred_check
      _
    $region47: #{tpu_custom_call.1} parent=1 // pred_check_branch
      %100 = sbr.rel (0) target = $region49
    $region48: #{tpu_custom_call.1} parent=1 // pred_region
      %102 = dma.done [#allocation6], 1024
    $region49: #{tpu_custom_call.1} parent=1 // pred_fallthru
      _
    // Predicated region
    $region50: #{tpu_custom_call.1} parent=1 // pred_check
      _
    $region51: #{tpu_custom_call.1} parent=1 // pred_check_branch
      %104 = sbr.rel (0) target = $region53
    $region52: #{tpu_custom_call.1} parent=1 // pred_region
      %106 = dma.done [#allocation9], 1024
    $region53: #{tpu_custom_call.1} parent=1 // pred_fallthru
      _
    // Predicated region
    $region54: #{tpu_custom_call.1} parent=1 // pred_check
      _
    $region55: #{tpu_custom_call.1} parent=1 // pred_check_branch
      %108 = sbr.rel (0) target = $region57
    $region56: #{tpu_custom_call.1} parent=1 // pred_region
      %110 = dma.done [#allocation9], 1024
    $region57: #{tpu_custom_call.1} parent=1 // pred_fallthru
      _
    %v111 = vld [vmem:[#allocation2] sm:$0xf]
    %v112 = vld [vmem:[#allocation2 + $0x4] sm:$0xf]
    %v113 = vld [vmem:[#allocation2 + $0x8] sm:$0xf]
    %v114 = vld [vmem:[#allocation2 + $0xc] sm:$0xf]
    %v115 = vld [vmem:[#allocation2 + $0x10] sm:$0xf]
    %v116 = vld [vmem:[#allocation2 + $0x14] sm:$0xf]
    %v117 = vld [vmem:[#allocation2 + $0x18] sm:$0xf]
    %v118 = vld [vmem:[#allocation2 + $0x1c] sm:$0xf]
    %v119 = vld [vmem:[#allocation5] sm:$0xf]
    %v120 = vld [vmem:[#allocation5 + $0x4] sm:$0xf]
    %v121 = vld [vmem:[#allocation5 + $0x8] sm:$0xf]
    %v122 = vld [vmem:[#allocation5 + $0xc] sm:$0xf]
    %v123 = vld [vmem:[#allocation5 + $0x10] sm:$0xf]
    %v124 = vld [vmem:[#allocation5 + $0x14] sm:$0xf]
    %v125 = vld [vmem:[#allocation5 + $0x18] sm:$0xf]
    %v126 = vld [vmem:[#allocation5 + $0x1c] sm:$0xf]
    %v127 = vld [vmem:[#allocation5 + $0x20] sm:$0xf]
    %v128 = vld [vmem:[#allocation5 + $0x24] sm:$0xf]
    %v129 = vld [vmem:[#allocation5 + $0x28] sm:$0xf]
    %v130 = vld [vmem:[#allocation5 + $0x2c] sm:$0xf]
    %v131 = vld [vmem:[#allocation5 + $0x30] sm:$0xf]
    %v132 = vld [vmem:[#allocation5 + $0x34] sm:$0xf]
    %v133 = vld [vmem:[#allocation5 + $0x38] sm:$0xf]
    %v134 = vld [vmem:[#allocation5 + $0x3c] sm:$0xf]
    %v135 = vld [vmem:[%s2] sm:$0x1]
    %v137 = vperm.slane %v135, 0
    %v147 = vunpack.c.l.b16 %v111
    %v148 = vunpack.c.l.b16 %v112
    %v149 = vunpack.c.l.b16 %v113
    %v150 = vunpack.c.l.b16 %v114
    %v151 = vunpack.c.l.b16 %v115
    %v152 = vunpack.c.l.b16 %v116
    %v153 = vunpack.c.l.b16 %v117
    %v154 = vunpack.c.l.b16 %v118
    %v155 = vpack.c.b16 %v148, %v147
    %v156 = vpack.c.b16 %v150, %v149
    %v157 = vpack.c.b16 %v152, %v151
    %v158 = vpack.c.b16 %v154, %v153
    %v179 = vunpack.c.l.b16 %v119
    %v180 = vunpack.c.l.b16 %v120
    %v181 = vunpack.c.l.b16 %v121
    %v182 = vunpack.c.l.b16 %v122
    %v183 = vunpack.c.l.b16 %v123
    %v184 = vunpack.c.l.b16 %v124
    %v185 = vunpack.c.l.b16 %v125
    %v186 = vunpack.c.l.b16 %v126
    %v187 = vunpack.c.l.b16 %v127
    %v188 = vunpack.c.l.b16 %v128
    %v189 = vunpack.c.l.b16 %v129
    %v190 = vunpack.c.l.b16 %v130
    %v191 = vunpack.c.l.b16 %v131
    %v192 = vunpack.c.l.b16 %v132
    %v193 = vunpack.c.l.b16 %v133
    %v194 = vunpack.c.l.b16 %v134
    %v195 = vpack.c.b16 %v180, %v179
    %v196 = vpack.c.b16 %v182, %v181
    %v197 = vpack.c.b16 %v184, %v183
    %v198 = vpack.c.b16 %v186, %v185
    %v199 = vpack.c.b16 %v188, %v187
    %v200 = vpack.c.b16 %v190, %v189
    %v201 = vpack.c.b16 %v192, %v191
    %v202 = vpack.c.b16 %v194, %v193
    %211 = vmatpush.bf16.msra.mxu0 %v202
    %212 = vmatpush.bf16.msra.mxu0 %v201
    %213 = vmatpush.bf16.msra.mxu0 %v200
    %214 = vmatpush.bf16.msra.mxu0 %v199
    %215 = vmatpush.bf16.msra.mxu0 %v198
    %216 = vmatpush.bf16.msra.mxu0 %v197
    %217 = vmatpush.bf16.msra.mxu0 %v196
    %218 = vmatpush.bf16.msra.mxu0 %v195
    %219 = vmatmul.bf16.gmra.mxu0 %v155
    %v220 = vpop.f32.mrf.mxu0
    %v221 = vadd.f32 %v137, %v220
    %v222 = vpop.f32.mrf.mxu0
    %v223 = vadd.f32 %v137, %v222
    %224 = vmatmul.bf16.gmra.mxu0 %v156
    %v225 = vpop.f32.mrf.mxu0
    %v226 = vadd.f32 %v137, %v225
    %v227 = vpop.f32.mrf.mxu0
    %v228 = vadd.f32 %v137, %v227
    %229 = vmatmul.bf16.gmra.mxu0 %v157
    %v230 = vpop.f32.mrf.mxu0
    %v231 = vadd.f32 %v137, %v230
    %v232 = vpop.f32.mrf.mxu0
    %v233 = vadd.f32 %v137, %v232
    %234 = vmatmul.bf16.gmra.mxu0 %v158
    %v235 = vpop.f32.mrf.mxu0
    %v236 = vadd.f32 %v137, %v235
    %v237 = vpop.f32.mrf.mxu0
    %v238 = vadd.f32 %v137, %v237
    %239 = vdwg.mxu0
    %vm240 = vcmp.gt.f32.partialorder %v221, 0.0
    %vm241 = vcmp.gt.f32.partialorder %v223, 0.0
    %vm242 = vcmp.gt.f32.partialorder %v226, 0.0
    %vm243 = vcmp.gt.f32.partialorder %v228, 0.0
    %vm244 = vcmp.gt.f32.partialorder %v231, 0.0
    %vm245 = vcmp.gt.f32.partialorder %v233, 0.0
    %vm246 = vcmp.gt.f32.partialorder %v236, 0.0
    %vm247 = vcmp.gt.f32.partialorder %v238, 0.0
    %v248 = vmul.f32 %v221, 0.01
    %v249 = vmul.f32 %v223, 0.01
    %v250 = vmul.f32 %v226, 0.01
    %v251 = vmul.f32 %v228, 0.01
    %v252 = vmul.f32 %v231, 0.01
    %v253 = vmul.f32 %v233, 0.01
    %v254 = vmul.f32 %v236, 0.01
    %v255 = vmul.f32 %v238, 0.01
    %v256 = vsel %vm240, %v221, %v248
    %v257 = vsel %vm241, %v223, %v249
    %v258 = vsel %vm242, %v226, %v250
    %v259 = vsel %vm243, %v228, %v251
    %v260 = vsel %vm244, %v231, %v252
    %v261 = vsel %vm245, %v233, %v253
    %v262 = vsel %vm246, %v236, %v254
    %v263 = vsel %vm247, %v238, %v255
    %v264 = vpack.c.bf16 %v257, %v256
    %v265 = vpack.c.bf16 %v259, %v258
    %v266 = vpack.c.bf16 %v261, %v260
    %v267 = vpack.c.bf16 %v263, %v262
    %v268 = vld [vmem:[#allocation7] sm:$0xf]
    %v269 = vld [vmem:[#allocation7 + $0x4] sm:$0xf]
    %v270 = vld [vmem:[#allocation7 + $0x8] sm:$0xf]
    %v271 = vld [vmem:[#allocation7 + $0xc] sm:$0xf]
    %v272 = vld [vmem:[#allocation7 + $0x10] sm:$0xf]
    %v273 = vld [vmem:[#allocation7 + $0x14] sm:$0xf]
    %v274 = vld [vmem:[#allocation7 + $0x18] sm:$0xf]
    %v275 = vld [vmem:[#allocation7 + $0x1c] sm:$0xf]
    %v276 = vld [vmem:[#allocation7 + $0x20] sm:$0xf]
    %v277 = vld [vmem:[#allocation7 + $0x24] sm:$0xf]
    %v278 = vld [vmem:[#allocation7 + $0x28] sm:$0xf]
    %v279 = vld [vmem:[#allocation7 + $0x2c] sm:$0xf]
    %v280 = vld [vmem:[#allocation7 + $0x30] sm:$0xf]
    %v281 = vld [vmem:[#allocation7 + $0x34] sm:$0xf]
    %v282 = vld [vmem:[#allocation7 + $0x38] sm:$0xf]
    %v283 = vld [vmem:[#allocation7 + $0x3c] sm:$0xf]
    %v284 = vld [vmem:[%s4] sm:$0x1]
    %v286 = vperm.slane %v284, 0
    %v304 = vunpack.c.l.b16 %v268
    %v305 = vunpack.c.l.b16 %v269
    %v306 = vunpack.c.l.b16 %v270
    %v307 = vunpack.c.l.b16 %v271
    %v308 = vunpack.c.l.b16 %v272
    %v309 = vunpack.c.l.b16 %v273
    %v310 = vunpack.c.l.b16 %v274
    %v311 = vunpack.c.l.b16 %v275
    %v312 = vunpack.c.l.b16 %v276
    %v313 = vunpack.c.l.b16 %v277
    %v314 = vunpack.c.l.b16 %v278
    %v315 = vunpack.c.l.b16 %v279
    %v316 = vunpack.c.l.b16 %v280
    %v317 = vunpack.c.l.b16 %v281
    %v318 = vunpack.c.l.b16 %v282
    %v319 = vunpack.c.l.b16 %v283
    %v320 = vpack.c.b16 %v305, %v304
    %v321 = vpack.c.b16 %v307, %v306
    %v322 = vpack.c.b16 %v309, %v308
    %v323 = vpack.c.b16 %v311, %v310
    %v324 = vpack.c.b16 %v313, %v312
    %v325 = vpack.c.b16 %v315, %v314
    %v326 = vpack.c.b16 %v317, %v316
    %v327 = vpack.c.b16 %v319, %v318
    %336 = vmatpush.bf16.msra.mxu0 %v327
    %337 = vmatpush.bf16.msra.mxu0 %v326
    %338 = vmatpush.bf16.msra.mxu0 %v325
    %339 = vmatpush.bf16.msra.mxu0 %v324
    %340 = vmatpush.bf16.msra.mxu0 %v323
    %341 = vmatpush.bf16.msra.mxu0 %v322
    %342 = vmatpush.bf16.msra.mxu0 %v321
    %343 = vmatpush.bf16.msra.mxu0 %v320
    %344 = vmatmul.bf16.gmra.mxu0 %v264
    %v345 = vpop.f32.mrf.mxu0
    %v346 = vadd.f32 %v286, %v345
    %v347 = vpop.f32.mrf.mxu0
    %v348 = vadd.f32 %v286, %v347
    %349 = vmatmul.bf16.gmra.mxu0 %v265
    %v350 = vpop.f32.mrf.mxu0
    %v351 = vadd.f32 %v286, %v350
    %v352 = vpop.f32.mrf.mxu0
    %v353 = vadd.f32 %v286, %v352
    %354 = vmatmul.bf16.gmra.mxu0 %v266
    %v355 = vpop.f32.mrf.mxu0
    %v356 = vadd.f32 %v286, %v355
    %v357 = vpop.f32.mrf.mxu0
    %v358 = vadd.f32 %v286, %v357
    %359 = vmatmul.bf16.gmra.mxu0 %v267
    %v360 = vpop.f32.mrf.mxu0
    %v361 = vadd.f32 %v286, %v360
    %v362 = vpop.f32.mrf.mxu0
    %v363 = vadd.f32 %v286, %v362
    %364 = vdwg.mxu0
    %vm365 = vcmp.gt.f32.partialorder %v346, 0.0
    %vm366 = vcmp.gt.f32.partialorder %v348, 0.0
    %vm367 = vcmp.gt.f32.partialorder %v351, 0.0
    %vm368 = vcmp.gt.f32.partialorder %v353, 0.0
    %vm369 = vcmp.gt.f32.partialorder %v356, 0.0
    %vm370 = vcmp.gt.f32.partialorder %v358, 0.0
    %vm371 = vcmp.gt.f32.partialorder %v361, 0.0
    %vm372 = vcmp.gt.f32.partialorder %v363, 0.0
    %v373 = vmul.f32 %v346, 0.01
    %v374 = vmul.f32 %v348, 0.01
    %v375 = vmul.f32 %v351, 0.01
    %v376 = vmul.f32 %v353, 0.01
    %v377 = vmul.f32 %v356, 0.01
    %v378 = vmul.f32 %v358, 0.01
    %v379 = vmul.f32 %v361, 0.01
    %v380 = vmul.f32 %v363, 0.01
    %v381 = vsel %vm365, %v346, %v373
    %v382 = vsel %vm366, %v348, %v374
    %v383 = vsel %vm367, %v351, %v375
    %v384 = vsel %vm368, %v353, %v376
    %v385 = vsel %vm369, %v356, %v377
    %v386 = vsel %vm370, %v358, %v378
    %v387 = vsel %vm371, %v361, %v379
    %v388 = vsel %vm372, %v363, %v380
    %v389 = vpack.c.bf16 %v382, %v381
    %v390 = vpack.c.bf16 %v384, %v383
    %v391 = vpack.c.bf16 %v386, %v385
    %v392 = vpack.c.bf16 %v388, %v387
    %v393 = vld [vmem:[#allocation8] sm:$0xf]
    %v394 = vld [vmem:[#allocation8 + $0x4] sm:$0xf]
    %v395 = vld [vmem:[#allocation8 + $0x8] sm:$0xf]
    %v396 = vld [vmem:[#allocation8 + $0xc] sm:$0xf]
    %v397 = vld [vmem:[#allocation8 + $0x10] sm:$0xf]
    %v398 = vld [vmem:[#allocation8 + $0x14] sm:$0xf]
    %v399 = vld [vmem:[#allocation8 + $0x18] sm:$0xf]
    %v400 = vld [vmem:[#allocation8 + $0x1c] sm:$0xf]
    %v401 = vld [vmem:[#allocation8 + $0x20] sm:$0xf]
    %v402 = vld [vmem:[#allocation8 + $0x24] sm:$0xf]
    %v403 = vld [vmem:[#allocation8 + $0x28] sm:$0xf]
    %v404 = vld [vmem:[#allocation8 + $0x2c] sm:$0xf]
    %v405 = vld [vmem:[#allocation8 + $0x30] sm:$0xf]
    %v406 = vld [vmem:[#allocation8 + $0x34] sm:$0xf]
    %v407 = vld [vmem:[#allocation8 + $0x38] sm:$0xf]
    %v408 = vld [vmem:[#allocation8 + $0x3c] sm:$0xf]
    %v409 = vld [vmem:[%s6] sm:$0x1]
    %v411 = vperm.slane %v409, 0
    %v429 = vunpack.c.l.b16 %v393
    %v430 = vunpack.c.l.b16 %v394
    %v431 = vunpack.c.l.b16 %v395
    %v432 = vunpack.c.l.b16 %v396
    %v433 = vunpack.c.l.b16 %v397
    %v434 = vunpack.c.l.b16 %v398
    %v435 = vunpack.c.l.b16 %v399
    %v436 = vunpack.c.l.b16 %v400
    %v437 = vunpack.c.l.b16 %v401
    %v438 = vunpack.c.l.b16 %v402
    %v439 = vunpack.c.l.b16 %v403
    %v440 = vunpack.c.l.b16 %v404
    %v441 = vunpack.c.l.b16 %v405
    %v442 = vunpack.c.l.b16 %v406
    %v443 = vunpack.c.l.b16 %v407
    %v444 = vunpack.c.l.b16 %v408
    %v445 = vpack.c.b16 %v430, %v429
    %v446 = vpack.c.b16 %v432, %v431
    %v447 = vpack.c.b16 %v434, %v433
    %v448 = vpack.c.b16 %v436, %v435
    %v449 = vpack.c.b16 %v438, %v437
    %v450 = vpack.c.b16 %v440, %v439
    %v451 = vpack.c.b16 %v442, %v441
    %v452 = vpack.c.b16 %v444, %v443
    %461 = vmatpush.bf16.msra.mxu0 %v452
    %462 = vmatpush.bf16.msra.mxu0 %v451
    %463 = vmatpush.bf16.msra.mxu0 %v450
    %464 = vmatpush.bf16.msra.mxu0 %v449
    %465 = vmatpush.bf16.msra.mxu0 %v448
    %466 = vmatpush.bf16.msra.mxu0 %v447
    %467 = vmatpush.bf16.msra.mxu0 %v446
    %468 = vmatpush.bf16.msra.mxu0 %v445
    %469 = vmatmul.bf16.gmra.mxu0 %v389
    %v470 = vpop.f32.mrf.mxu0
    %v471 = vadd.f32 %v411, %v470
    %v472 = vpop.f32.mrf.mxu0
    %v473 = vadd.f32 %v411, %v472
    %474 = vmatmul.bf16.gmra.mxu0 %v390
    %v475 = vpop.f32.mrf.mxu0
    %v476 = vadd.f32 %v411, %v475
    %v477 = vpop.f32.mrf.mxu0
    %v478 = vadd.f32 %v411, %v477
    %479 = vmatmul.bf16.gmra.mxu0 %v391
    %v480 = vpop.f32.mrf.mxu0
    %v481 = vadd.f32 %v411, %v480
    %v482 = vpop.f32.mrf.mxu0
    %v483 = vadd.f32 %v411, %v482
    %484 = vmatmul.bf16.gmra.mxu0 %v392
    %v485 = vpop.f32.mrf.mxu0
    %v486 = vadd.f32 %v411, %v485
    %v487 = vpop.f32.mrf.mxu0
    %v488 = vadd.f32 %v411, %v487
    %489 = vdwg.mxu0
    %vm490 = vcmp.gt.f32.partialorder %v471, 0.0
    %vm491 = vcmp.gt.f32.partialorder %v473, 0.0
    %vm492 = vcmp.gt.f32.partialorder %v476, 0.0
    %vm493 = vcmp.gt.f32.partialorder %v478, 0.0
    %vm494 = vcmp.gt.f32.partialorder %v481, 0.0
    %vm495 = vcmp.gt.f32.partialorder %v483, 0.0
    %vm496 = vcmp.gt.f32.partialorder %v486, 0.0
    %vm497 = vcmp.gt.f32.partialorder %v488, 0.0
    %v498 = vmul.f32 %v471, 0.01
    %v499 = vmul.f32 %v473, 0.01
    %v500 = vmul.f32 %v476, 0.01
    %v501 = vmul.f32 %v478, 0.01
    %v502 = vmul.f32 %v481, 0.01
    %v503 = vmul.f32 %v483, 0.01
    %v504 = vmul.f32 %v486, 0.01
    %v505 = vmul.f32 %v488, 0.01
    %v506 = vsel %vm490, %v471, %v498
    %v507 = vsel %vm491, %v473, %v499
    %v508 = vsel %vm492, %v476, %v500
    %v509 = vsel %vm493, %v478, %v501
    %v510 = vsel %vm494, %v481, %v502
    %v511 = vsel %vm495, %v483, %v503
    %v512 = vsel %vm496, %v486, %v504
    %v513 = vsel %vm497, %v488, %v505
    %v514 = vpack.c.bf16 %v506, %v506
    %v515 = vpack.c.bf16 %v507, %v507
    %v516 = vpack.c.bf16 %v508, %v508
    %v517 = vpack.c.bf16 %v509, %v509
    %v518 = vpack.c.bf16 %v510, %v510
    %v519 = vpack.c.bf16 %v511, %v511
    %v520 = vpack.c.bf16 %v512, %v512
    %v521 = vpack.c.bf16 %v513, %v513
    %522 = vst [vmem:[#allocation11] sm:$0xf] %v514
    %523 = vst [vmem:[#allocation11 + $0x8] sm:$0xf] %v515
    %524 = vst [vmem:[#allocation11 + $0x10] sm:$0xf] %v516
    %525 = vst [vmem:[#allocation11 + $0x18] sm:$0xf] %v517
    %526 = vst [vmem:[#allocation11 + $0x20] sm:$0xf] %v518
    %527 = vst [vmem:[#allocation11 + $0x28] sm:$0xf] %v519
    %528 = vst [vmem:[#allocation11 + $0x30] sm:$0xf] %v520
    %529 = vst [vmem:[#allocation11 + $0x38] sm:$0xf] %v521
    %v530 = vld [vmem:[#allocation10] sm:$0xf]
    %v531 = vld [vmem:[#allocation10 + $0x4] sm:$0xf]
    %v532 = vld [vmem:[#allocation10 + $0x8] sm:$0xf]
    %v533 = vld [vmem:[#allocation10 + $0xc] sm:$0xf]
    %v534 = vld [vmem:[#allocation10 + $0x10] sm:$0xf]
    %v535 = vld [vmem:[#allocation10 + $0x14] sm:$0xf]
    %v536 = vld [vmem:[#allocation10 + $0x18] sm:$0xf]
    %v537 = vld [vmem:[#allocation10 + $0x1c] sm:$0xf]
    %v538 = vld [vmem:[#allocation10 + $0x20] sm:$0xf]
    %v539 = vld [vmem:[#allocation10 + $0x24] sm:$0xf]
    %v540 = vld [vmem:[#allocation10 + $0x28] sm:$0xf]
    %v541 = vld [vmem:[#allocation10 + $0x2c] sm:$0xf]
    %v542 = vld [vmem:[#allocation10 + $0x30] sm:$0xf]
    %v543 = vld [vmem:[#allocation10 + $0x34] sm:$0xf]
    %v544 = vld [vmem:[#allocation10 + $0x38] sm:$0xf]
    %v545 = vld [vmem:[#allocation10 + $0x3c] sm:$0xf]
    %v546 = vld [vmem:[%s8] sm:$0x1]
    %v548 = vperm.slane %v546, 0
    %v558 = vunpack.c.l.b16 %v514
    %v559 = vunpack.c.l.b16 %v515
    %v560 = vunpack.c.l.b16 %v516
    %v561 = vunpack.c.l.b16 %v517
    %v562 = vunpack.c.l.b16 %v518
    %v563 = vunpack.c.l.b16 %v519
    %v564 = vunpack.c.l.b16 %v520
    %v565 = vunpack.c.l.b16 %v521
    %v566 = vpack.c.b16 %v559, %v558
    %v567 = vpack.c.b16 %v561, %v560
    %v568 = vpack.c.b16 %v563, %v562
    %v569 = vpack.c.b16 %v565, %v564
    %v590 = vunpack.c.l.b16 %v530
    %v591 = vunpack.c.l.b16 %v531
    %v592 = vunpack.c.l.b16 %v532
    %v593 = vunpack.c.l.b16 %v533
    %v594 = vunpack.c.l.b16 %v534
    %v595 = vunpack.c.l.b16 %v535
    %v596 = vunpack.c.l.b16 %v536
    %v597 = vunpack.c.l.b16 %v537
    %v598 = vunpack.c.l.b16 %v538
    %v599 = vunpack.c.l.b16 %v539
    %v600 = vunpack.c.l.b16 %v540
    %v601 = vunpack.c.l.b16 %v541
    %v602 = vunpack.c.l.b16 %v542
    %v603 = vunpack.c.l.b16 %v543
    %v604 = vunpack.c.l.b16 %v544
    %v605 = vunpack.c.l.b16 %v545
    %v606 = vpack.c.b16 %v591, %v590
    %v607 = vpack.c.b16 %v593, %v592
    %v608 = vpack.c.b16 %v595, %v594
    %v609 = vpack.c.b16 %v597, %v596
    %v610 = vpack.c.b16 %v599, %v598
    %v611 = vpack.c.b16 %v601, %v600
    %v612 = vpack.c.b16 %v603, %v602
    %v613 = vpack.c.b16 %v605, %v604
    %622 = vmatpush.bf16.msra.mxu0 %v613
    %623 = vmatpush.bf16.msra.mxu0 %v612
    %624 = vmatpush.bf16.msra.mxu0 %v611
    %625 = vmatpush.bf16.msra.mxu0 %v610
    %626 = vmatpush.bf16.msra.mxu0 %v609
    %627 = vmatpush.bf16.msra.mxu0 %v608
    %628 = vmatpush.bf16.msra.mxu0 %v607
    %629 = vmatpush.bf16.msra.mxu0 %v606
    %630 = vmatmul.bf16.gmra.mxu0 %v566
    %v631 = vpop.f32.mrf.mxu0
    %v632 = vadd.f32 %v548, %v631
    %v633 = vpop.f32.mrf.mxu0
    %v634 = vadd.f32 %v548, %v633
    %635 = vmatmul.bf16.gmra.mxu0 %v567
    %v636 = vpop.f32.mrf.mxu0
    %v637 = vadd.f32 %v548, %v636
    %v638 = vpop.f32.mrf.mxu0
    %v639 = vadd.f32 %v548, %v638
    %640 = vmatmul.bf16.gmra.mxu0 %v568
    %v641 = vpop.f32.mrf.mxu0
    %v642 = vadd.f32 %v548, %v641
    %v643 = vpop.f32.mrf.mxu0
    %v644 = vadd.f32 %v548, %v643
    %645 = vmatmul.bf16.gmra.mxu0 %v569
    %v646 = vpop.f32.mrf.mxu0
    %v647 = vadd.f32 %v548, %v646
    %v648 = vpop.f32.mrf.mxu0
    %v649 = vadd.f32 %v548, %v648
    %650 = vdwg.mxu0
    %v651 = vpack.c.bf16 %v632, %v632
    %v652 = vpack.c.bf16 %v634, %v634
    %v653 = vpack.c.bf16 %v637, %v637
    %v654 = vpack.c.bf16 %v639, %v639
    %v655 = vpack.c.bf16 %v642, %v642
    %v656 = vpack.c.bf16 %v644, %v644
    %v657 = vpack.c.bf16 %v647, %v647
    %v658 = vpack.c.bf16 %v649, %v649
    %659 = vst [vmem:[#allocation11 + $0x4] sm:$0xf] %v651
    %660 = vst [vmem:[#allocation11 + $0xc] sm:$0xf] %v652
    %661 = vst [vmem:[#allocation11 + $0x14] sm:$0xf] %v653
    %662 = vst [vmem:[#allocation11 + $0x1c] sm:$0xf] %v654
    %663 = vst [vmem:[#allocation11 + $0x24] sm:$0xf] %v655
    %664 = vst [vmem:[#allocation11 + $0x2c] sm:$0xf] %v656
    %665 = vst [vmem:[#allocation11 + $0x34] sm:$0xf] %v657
    %666 = vst [vmem:[#allocation11 + $0x3c] sm:$0xf] %v658
    // Predicated region
    $region58: #{tpu_custom_call.1} parent=1 // pred_check
      _
    $region59: #{tpu_custom_call.1} parent=1 // pred_check_branch
      %668 = sbr.rel (0) target = $region61
    $region60: #{tpu_custom_call.1} parent=1 // pred_region
      %670 = vsyncadd [#allocation4], 0
      %s671 = sshll.u32 [#allocation11], 4
      %s672 = int_to_ptr.vmem [resolvable:$true] %s671
      %s673 = sshll.u32 %s9, 4
      %s674 = int_to_ptr.hbm [resolvable:$true] %s673
      %679 = dma.vmem_to_hbm [thread:$0]  %s672, 1024, %s674, [#allocation4], 128, 128, 8
    $region61: #{tpu_custom_call.1} parent=1 // pred_fallthru
      _
    // Predicated region
    $region62: #{tpu_custom_call.1} parent=1 // pred_check
      _
    $region63: #{tpu_custom_call.1} parent=1 // pred_check_branch
      %681 = sbr.rel (0) target = $region65
    $region64: #{tpu_custom_call.1} parent=1 // pred_region
      %683 = dma.done [#allocation4], 1024
    $region65: #{tpu_custom_call.1} parent=1 // pred_fallthru
      _
    %684 = vsyncpa [#allocation3], 1
    %685 = vsyncpa [#allocation6], 1
    %686 = vsyncpa [#allocation9], 1
    %687 = vsyncpa [#allocation4], 1

</llo_original>
